<compile_context>
chip_gen: v6e
topology: v6e:2x2x1
jax: 0.10.0
libtpu: 0.0.40
codegen_flags: <defaults>
</compile_context>

<pallas_src>
import functools

import jax
import jax.numpy as jnp
from jax.experimental import pallas as pl
from jax.experimental.pallas import tpu as pltpu


_NEG_BIG = -1e30  # additive bias that removes a column from the softmax


def _round_up(x, m):
    return (x + m - 1) // m * m


def _gen_supcon_kernel(a_feat_ref, a_lab_ref, c_feat_ref, c_lab_ref,
                       loss_ref, *, scale):
    """One anchor-row tile against the (VMEM-resident) contrast set.

    a_feat_ref : [tm, D+1] f32  anchors * (1/T) with a trailing ones column
    a_lab_ref  : [tm, C]   f32  L2-normalized anchor labels
    c_feat_ref : [D+1, Kp] f32  contrast^T with a trailing bias row
                                (0 = valid column, -1e30 = invalid / padding)
    c_lab_ref  : [C, Kp]   f32  L2-normalized contrast labels^T (0 if invalid)
    loss_ref   : [tm, 1]   f32  per-anchor loss
    """
    tm = a_feat_ref.shape[0]
    kp = c_feat_ref.shape[1]
    row0 = pl.program_id(0) * tm

    # Positive mask (label cos-overlap): operands are pre-normalized, so the
    # MXU matmul already IS the mask up to zeroing the global diagonal.
    lab_dot = jnp.dot(a_lab_ref[...], c_lab_ref[...],
                      preferred_element_type=jnp.float32)            # [tm, Kp]

    # Feature logits: anchors carry 1/T and a ones column, contrast carries a
    # bias row, so adc == (a . c)/T + bias with no extra [tm, Kp] VPU pass.
    adc = jnp.dot(a_feat_ref[...], c_feat_ref[...],
                  preferred_element_type=jnp.float32)                # [tm, Kp]

    # Global-diagonal boolean (fill_diagonal_(0) in the reference).
    row_ids = row0 + jax.lax.broadcasted_iota(jnp.int32, (tm, kp), 0)
    col_ids = jax.lax.broadcasted_iota(jnp.int32, (tm, kp), 1)
    diag = row_ids == col_ids

    logits = adc - jnp.max(adc, axis=1, keepdims=True)               # [tm, Kp]
    exp_logits = jnp.where(diag, 0.0, jnp.exp(logits))               # invalid -> exp(-1e30)=0
    log_z = jnp.log(jnp.sum(exp_logits, axis=1, keepdims=True))      # [tm, 1]

    mask = jnp.where(diag, 0.0, lab_dot)                             # [tm, Kp]
    sum_mask = jnp.sum(mask, axis=1, keepdims=True)                  # [tm, 1]
    sum_mask_logits = jnp.sum(mask * logits, axis=1, keepdims=True)  # [tm, 1]

    # Fused log_prob: sum(mask*(logits - logZ)) == sum(mask*logits) - logZ*sum(mask)
    num = sum_mask_logits - log_z * sum_mask
    den = sum_mask + 1e-8
    loss_ref[...] = (-scale) * num / den                             # exact divide, [tm,1]


def gen_supcon_loss_rows(anchor_features, anchor_labels,
                         contrast_features, contrast_labels, contrast_valid,
                         *, temperature=0.07, base_temperature=0.07, tm=None):
    """Per-anchor loss vector [M] computed by the Pallas kernel.

    contrast_valid[j] == True means contrast row j participates (anchors and
    filled queue slots); invalid rows are excluded from both the positive mask
    and the softmax denominator (they do not exist in the PyTorch reference).
    """
    M, D = anchor_features.shape
    K = contrast_features.shape[0]
    C = anchor_labels.shape[1]
    k_pad = _round_up(K, 128)

    inv_t = 1.0 / float(temperature)
    scale = float(temperature) / float(base_temperature)

    # ---- anchors: scale by 1/T, append ones column, normalize labels -------
    a_feat = anchor_features.astype(jnp.float32) * inv_t
    a_feat = jnp.concatenate([a_feat, jnp.ones((M, 1), jnp.float32)], axis=1)
    a_lab = anchor_labels.astype(jnp.float32)
    a_lab = a_lab / jnp.linalg.norm(a_lab, axis=-1, keepdims=True)

    # Row tile: >= 2 grid steps whenever M >= 16 (v7x has 2 TensorCores), cap
    # at the MXU-native 128, keep a multiple of 8 (f32 sublanes).
    if tm is None:
        if M > 256:
            tm = 128
        elif M >= 16:
            tm = _round_up(-(-M // 2), 8)
        else:
            tm = _round_up(max(M, 1), 8)
    m_pad = _round_up(M, tm)
    if m_pad != M:
        # Padded rows: zero features/labels -> mask 0, num 0 -> finite loss 0
        # (discarded by the final slice anyway).
        a_feat = jnp.pad(a_feat, ((0, m_pad - M), (0, 0)))
        a_lab = jnp.pad(a_lab, ((0, m_pad - M), (0, 0)))

    # ---- contrast: lane-dense [*, k_pad] layouts, built once per call ------
    valid = jnp.pad(contrast_valid.astype(jnp.float32), (0, k_pad - K))       # [Kp]
    c_feat = jnp.pad(contrast_features.astype(jnp.float32),
                     ((0, k_pad - K), (0, 0))) * valid[:, None]               # [Kp, D]
    bias = jnp.where(valid > 0, 0.0, jnp.float32(_NEG_BIG))                   # [Kp]
    c_feat_t = jnp.concatenate([c_feat, bias[:, None]], axis=1).T             # [D+1, Kp]

    c_lab = jnp.pad(contrast_labels.astype(jnp.float32),
                    ((0, k_pad - K), (0, 0))) * valid[:, None]                # [Kp, C]
    c_norm = jnp.linalg.norm(c_lab, axis=-1, keepdims=True)
    c_lab_t = jnp.where(c_norm > 0,
                        c_lab / jnp.maximum(c_norm, 1e-30), 0.0).T            # [C, Kp]

    kernel = functools.partial(_gen_supcon_kernel, scale=scale)

    # TODO(synk): for queue_size*feat_dim beyond VMEM (esp. v7x 64 MiB) add a
    # K grid axis ("arbitrary", innermost) with an online-softmax accumulator.
    out = pl.pallas_call(
        kernel,
        out_shape=jax.ShapeDtypeStruct((m_pad, 1), jnp.float32),
        grid_spec=pltpu.PrefetchScalarGridSpec(
            num_scalar_prefetch=0,
            grid=(m_pad // tm,),
            in_specs=[
                pl.BlockSpec((tm, D + 1), lambda i: (i, 0)),    # anchors (scaled, +ones)
                pl.BlockSpec((tm, C), lambda i: (i, 0)),        # anchor labels (normed)
                pl.BlockSpec((D + 1, k_pad), lambda i: (0, 0)),  # contrast^T (+bias row)
                pl.BlockSpec((C, k_pad), lambda i: (0, 0)),      # contrast labels^T
            ],
            out_specs=pl.BlockSpec((tm, 1), lambda i: (i, 0)),
        ),
        compiler_params=pltpu.CompilerParams(
            dimension_semantics=("parallel",)),
    )(a_feat, a_lab, c_feat_t, c_lab_t)
    return out[:M, 0]


class GenSupConLossv2QueuePallas:
    """JAX/Pallas port of GenSupConLossv2_Queue (forward pass).

    The queue is a fixed-size circular buffer with a fill counter, so all
    kernel shapes are static (the pallas_call compiles once per anchor batch
    size).  Unfilled slots are masked out inside the kernel, which matches the
    growing-queue semantics of the PyTorch module.
    """

    def __init__(self, temperature=0.07, base_temperature=0.07, queue_size=1024):
        self.temperature = float(temperature)
        self.base_temperature = float(base_temperature)
        self.queue_size = int(queue_size)
        self.queue_feats = None
        self.queue_labels = None
        self.queue_ptr = 0
        self.queue_fill = 0

    def _ensure_queue(self, feat_dim, num_cls):
        if self.queue_feats is None:
            self.queue_feats = jnp.zeros((self.queue_size, feat_dim), jnp.float32)
            self.queue_labels = jnp.zeros((self.queue_size, num_cls), jnp.float32)
            self.queue_ptr = 0
            self.queue_fill = 0

    def _dequeue_and_enqueue(self, feats, labels):
        n = feats.shape[0]
        if n >= self.queue_size:
            feats = feats[-self.queue_size:]
            labels = labels[-self.queue_size:]
            n = self.queue_size
        idx = (self.queue_ptr + jnp.arange(n)) % self.queue_size
        self.queue_feats = self.queue_feats.at[idx].set(feats)
        self.queue_labels = self.queue_labels.at[idx].set(labels)
        self.queue_ptr = int((self.queue_ptr + n) % self.queue_size)
        self.queue_fill = int(min(self.queue_fill + n, self.queue_size))

    def forward(self, features, labels, anc_mask=None):
        anchor_features = jnp.concatenate(features, axis=0).astype(jnp.float32)
        anchor_labels = jnp.concatenate(labels, axis=0).astype(jnp.float32)
        M, feat_dim = anchor_features.shape
        num_cls = anchor_labels.shape[1]
        self._ensure_queue(feat_dim, num_cls)

        contrast_features = jnp.concatenate(
            [anchor_features, self.queue_feats], axis=0)
        contrast_labels = jnp.concatenate(
            [anchor_labels, self.queue_labels], axis=0)
        contrast_valid = jnp.concatenate(
            [jnp.ones((M,), jnp.bool_),
             jnp.arange(self.queue_size) < self.queue_fill], axis=0)

        loss_rows = gen_supcon_loss_rows(
            anchor_features, anchor_labels,
            contrast_features, contrast_labels, contrast_valid,
            temperature=self.temperature, base_temperature=self.base_temperature)

        if anc_mask is not None:
            select = jnp.concatenate(anc_mask).astype(jnp.float32)
            loss = jnp.sum(loss_rows * select) / jnp.maximum(jnp.sum(select), 1.0)
        else:
            loss = jnp.mean(loss_rows)

        self._dequeue_and_enqueue(anchor_features, anchor_labels)
        return loss

    __call__ = forward


def _reference_loss(anchor_features, anchor_labels, contrast_features,
                    contrast_labels, temperature, base_temperature):
    """Pure-JAX reference mirroring the PyTorch forward (verification only)."""
    M = anchor_features.shape[0]
    K = contrast_features.shape[0]
    anchor_norm = jnp.linalg.norm(anchor_labels, axis=-1, keepdims=True)
    contrast_norm = jnp.linalg.norm(contrast_labels, axis=-1, keepdims=True)
    deno = anchor_norm @ contrast_norm.T
    mask = (anchor_labels @ contrast_labels.T) / deno
    logits_mask = jnp.ones((M, K), jnp.float32)
    d = min(M, K)
    logits_mask = logits_mask.at[jnp.arange(d), jnp.arange(d)].set(0.0)
    mask = mask * logits_mask
    adc = (anchor_features @ contrast_features.T) / temperature
    logits = adc - jnp.max(adc, axis=1, keepdims=True)
    exp_logits = jnp.exp(logits) * logits_mask
    log_prob = logits - jnp.log(jnp.sum(exp_logits, axis=1, keepdims=True))
    mlpp = jnp.sum(mask * log_prob, axis=1) / (jnp.sum(mask, axis=1) + 1e-8)
    return jnp.mean(-(temperature / base_temperature) * mlpp)


if __name__ == "__main__":
    key = jax.random.PRNGKey(0)
    N, D, C = 8, 32, 4   # per-view batch, feature dim, num classes

    k1, k2, k3, k4 = jax.random.split(key, 4)
    f1 = jax.random.normal(k1, (N, D), jnp.float32)
    f2 = jax.random.normal(k2, (N, D), jnp.float32)
    f1 = f1 / jnp.linalg.norm(f1, axis=-1, keepdims=True)
    f2 = f2 / jnp.linalg.norm(f2, axis=-1, keepdims=True)
    l1 = jax.nn.one_hot(jax.random.randint(k3, (N,), 0, C), C, dtype=jnp.float32)
    l2 = jax.nn.one_hot(jax.random.randint(k4, (N,), 0, C), C, dtype=jnp.float32)

    crit = GenSupConLossv2QueuePallas(temperature=0.07, base_temperature=0.07,
                                      queue_size=1024)

    # --- call 1: queue is empty (contrast == anchors) ---
    loss1 = crit((f1, f2), (l1, l2))
    jax.block_until_ready(loss1)
    anc_f1 = jnp.concatenate([f1, f2], 0)
    anc_l1 = jnp.concatenate([l1, l2], 0)
    ref1 = _reference_loss(anc_f1, anc_l1, anc_f1, anc_l1, 0.07, 0.07)

    # --- call 2: queue now holds the previous 2N anchors ---
    k5, k6, k7, k8 = jax.random.split(jax.random.PRNGKey(1), 4)
    g1 = jax.random.normal(k5, (N, D), jnp.float32)
    g2 = jax.random.normal(k6, (N, D), jnp.float32)
    g1 = g1 / jnp.linalg.norm(g1, axis=-1, keepdims=True)
    g2 = g2 / jnp.linalg.norm(g2, axis=-1, keepdims=True)
    m1 = jax.nn.one_hot(jax.random.randint(k7, (N,), 0, C), C, dtype=jnp.float32)
    m2 = jax.nn.one_hot(jax.random.randint(k8, (N,), 0, C), C, dtype=jnp.float32)

    q_feats = crit.queue_feats[:crit.queue_fill]
    q_labels = crit.queue_labels[:crit.queue_fill]
    loss2 = crit((g1, g2), (m1, m2))
    jax.block_until_ready(loss2)
    anc_f2 = jnp.concatenate([g1, g2], 0)
    anc_l2 = jnp.concatenate([m1, m2], 0)
    ref2 = _reference_loss(anc_f2, anc_l2,
                           jnp.concatenate([anc_f2, q_feats], 0),
                           jnp.concatenate([anc_l2, q_labels], 0),
                           0.07, 0.07)

    # MXU default precision rounds the feature matmul; compare against the
    # plain-JAX reference at a correspondingly relaxed tolerance.
    assert jnp.allclose(loss1, ref1, rtol=5e-2, atol=5e-2), (loss1, ref1)
    assert jnp.allclose(loss2, ref2, rtol=5e-2, atol=5e-2), (loss2, ref2)
    print("KERNEL_OK")
</pallas_src>

<mosaic_0001>
module attributes {stable_mosaic.version = 11 : i64} {
  func.func @_gen_supcon_kernel(%arg0: i32, %arg1: memref<8x33xf32, #tpu.memory_space<vmem>>, %arg2: memref<8x4xf32, #tpu.memory_space<vmem>>, %arg3: memref<33x1152xf32, #tpu.memory_space<vmem>>, %arg4: memref<4x1152xf32, #tpu.memory_space<vmem>>, %arg5: memref<8x1xf32, #tpu.memory_space<vmem>>) attributes {dimension_semantics = [#tpu.dimension_semantics<parallel>], iteration_bounds = array<i64: 2>, scalar_prefetch = 0 : i64, scratch_operands = 0 : i64, tpu.core_type = #tpu.core_type<tc>, window_params = [{transform_indices = @transform_0, window_bounds = array<i64: 8, 33>}, {transform_indices = @transform_1, window_bounds = array<i64: 8, 4>}, {pipeline_mode = #tpu.pipeline_mode<synchronous>, transform_indices = @transform_2, window_bounds = array<i64: 33, 1152>}, {pipeline_mode = #tpu.pipeline_mode<synchronous>, transform_indices = @transform_3, window_bounds = array<i64: 4, 1152>}, {transform_indices = @transform_4, window_bounds = array<i64: 8, 1>}]} {
    %c8_i32 = arith.constant 8 : i32
    %0 = arith.muli %arg0, %c8_i32 : i32
    %c0 = arith.constant 0 : index
    %c0_0 = arith.constant 0 : index
    %1 = vector.load %arg2[%c0, %c0_0] : memref<8x4xf32, #tpu.memory_space<vmem>>, vector<8x4xf32>
    %c0_1 = arith.constant 0 : index
    %c0_2 = arith.constant 0 : index
    %2 = vector.load %arg4[%c0_1, %c0_2] : memref<4x1152xf32, #tpu.memory_space<vmem>>, vector<4x1152xf32>
    %cst = arith.constant dense<0.000000e+00> : vector<8x1152xf32>
    %3 = tpu.matmul %1, %2, %cst {dimension_numbers = #tpu.dot_dimension_numbers<[1], [0], [0], [1], [0, 0, 1, 1], [], []>} : vector<8x4xf32>, vector<4x1152xf32>, vector<8x1152xf32> -> vector<8x1152xf32>
    %c0_3 = arith.constant 0 : index
    %c0_4 = arith.constant 0 : index
    %4 = vector.load %arg1[%c0_3, %c0_4] : memref<8x33xf32, #tpu.memory_space<vmem>>, vector<8x33xf32>
    %c0_5 = arith.constant 0 : index
    %c0_6 = arith.constant 0 : index
    %5 = vector.load %arg3[%c0_5, %c0_6] : memref<33x1152xf32, #tpu.memory_space<vmem>>, vector<33x1152xf32>
    %cst_7 = arith.constant dense<0.000000e+00> : vector<8x1152xf32>
    %6 = tpu.matmul %4, %5, %cst_7 {dimension_numbers = #tpu.dot_dimension_numbers<[1], [0], [0], [1], [0, 0, 1, 1], [], []>} : vector<8x33xf32>, vector<33x1152xf32>, vector<8x1152xf32> -> vector<8x1152xf32>
    %7 = tpu.iota {dimensions = array<i32: 0>} : vector<8x1152xi32>
    %8 = vector.broadcast %0 : i32 to vector<8x1152xi32>
    %9 = arith.addi %8, %7 : vector<8x1152xi32>
    %10 = tpu.iota {dimensions = array<i32: 1>} : vector<8x1152xi32>
    %11 = arith.cmpi eq, %9, %10 : vector<8x1152xi32>
    %cst_8 = arith.constant dense<0xFF800000> : vector<8xf32>
    %12 = vector.multi_reduction <maximumf>, %6, %cst_8 [1] : vector<8x1152xf32> to vector<8xf32>
    %13 = vector.shape_cast %12 : vector<8xf32> to vector<8x1xf32>
    %14 = vector.broadcast %13 : vector<8x1xf32> to vector<8x1152xf32>
    %15 = arith.subf %6, %14 : vector<8x1152xf32>
    %16 = math.exp %15 : vector<8x1152xf32>
    %cst_9 = arith.constant 0.000000e+00 : f32
    %17 = vector.broadcast %cst_9 : f32 to vector<8x1152xf32>
    %18 = arith.select %11, %17, %16 : vector<8x1152xi1>, vector<8x1152xf32>
    %cst_10 = arith.constant dense<0.000000e+00> : vector<8xf32>
    %19 = vector.multi_reduction <add>, %18, %cst_10 [1] : vector<8x1152xf32> to vector<8xf32>
    %20 = vector.shape_cast %19 : vector<8xf32> to vector<8x1xf32>
    %21 = math.log %20 : vector<8x1xf32>
    %cst_11 = arith.constant 0.000000e+00 : f32
    %22 = vector.broadcast %cst_11 : f32 to vector<8x1152xf32>
    %23 = arith.select %11, %22, %3 : vector<8x1152xi1>, vector<8x1152xf32>
    %cst_12 = arith.constant dense<0.000000e+00> : vector<8xf32>
    %24 = vector.multi_reduction <add>, %23, %cst_12 [1] : vector<8x1152xf32> to vector<8xf32>
    %25 = vector.shape_cast %24 : vector<8xf32> to vector<8x1xf32>
    %26 = arith.mulf %23, %15 : vector<8x1152xf32>
    %cst_13 = arith.constant dense<0.000000e+00> : vector<8xf32>
    %27 = vector.multi_reduction <add>, %26, %cst_13 [1] : vector<8x1152xf32> to vector<8xf32>
    %28 = vector.shape_cast %27 : vector<8xf32> to vector<8x1xf32>
    %29 = arith.mulf %21, %25 : vector<8x1xf32>
    %30 = arith.subf %28, %29 : vector<8x1xf32>
    %cst_14 = arith.constant 9.99999993E-9 : f32
    %31 = vector.broadcast %cst_14 : f32 to vector<8x1xf32>
    %32 = arith.addf %25, %31 : vector<8x1xf32>
    %cst_15 = arith.constant -1.000000e+00 : f32
    %33 = vector.broadcast %cst_15 : f32 to vector<8x1xf32>
    %34 = arith.mulf %33, %30 : vector<8x1xf32>
    %35 = arith.divf %34, %32 : vector<8x1xf32>
    %c0_16 = arith.constant 0 : index
    %c0_17 = arith.constant 0 : index
    %36 = vector.load %arg5[%c0_16, %c0_17] : memref<8x1xf32, #tpu.memory_space<vmem>>, vector<8x1xf32>
    tpu.vector_store %arg5[%c0_16, %c0_17], %35 {strides = array<i32>} : memref<8x1xf32, #tpu.memory_space<vmem>>, vector<8x1xf32>,
    return
  }
  func.func @transform_0(%arg0: i32) -> (i32, i32) {
    %c0_i32 = arith.constant 0 : i32
    %c0_i32_0 = arith.constant 0 : i32
    return %arg0, %c0_i32 : i32, i32
  }
  func.func @transform_1(%arg0: i32) -> (i32, i32) {
    %c0_i32 = arith.constant 0 : i32
    %c0_i32_0 = arith.constant 0 : i32
    return %arg0, %c0_i32 : i32, i32
  }
  func.func @transform_2(%arg0: i32) -> (i32, i32) {
    %c0_i32 = arith.constant 0 : i32
    %c0_i32_0 = arith.constant 0 : i32
    %c0_i32_1 = arith.constant 0 : i32
    return %c0_i32, %c0_i32_0 : i32, i32
  }
  func.func @transform_3(%arg0: i32) -> (i32, i32) {
    %c0_i32 = arith.constant 0 : i32
    %c0_i32_0 = arith.constant 0 : i32
    %c0_i32_1 = arith.constant 0 : i32
    return %c0_i32, %c0_i32_0 : i32, i32
  }
  func.func @transform_4(%arg0: i32) -> (i32, i32) {
    %c0_i32 = arith.constant 0 : i32
    %c0_i32_0 = arith.constant 0 : i32
    return %arg0, %c0_i32 : i32, i32
  }
}

</mosaic_0001>

<llo_original>
// kernel: tpu_custom_call.1
$region0: #{tpu_custom_call.1}
  #allocation0 [shape = 'u32[]', space=smem, size = 0x4, offset = 0x4, fixed_abs, tag = 'smem constant byte address 0x4 - core index']
  #allocation1 [shape = 'u32[144,128]{1,0:T(1,128)}', space=vmem, size = 0x12000, scoped, tag = 'internal scratch']
  %s0 = inlined_call_operand.vmem [shape: f32[16,33], index: 0, kind: input, shape index: {}]
  %s1 = inlined_call_operand.vmem [shape: f32[16,4], index: 1, kind: input, shape index: {}]
  %s2 = inlined_call_operand.hbm [shape: f32[33,1152], index: 2, kind: input, shape index: {}]
  %s3 = inlined_call_operand.hbm [shape: f32[4,1152], index: 3, kind: input, shape index: {}]
  %s4 = inlined_call_operand.vmem [shape: f32[16,1], index: 4, kind: output, shape index: {}]
  %s5 = sld [smem:[#allocation0]]
  $region57: #{tpu_custom_call.1} parent=0
    _
  %s7 = ssub.s32 1, %s5
  %s8 = scalar_select 0, %s7, %s5
  $region1: #{tpu_custom_call.1} parent=0
    #allocation2 [shape = 'u8[184320]{0}', space=vmem, size = 0x2d000, scoped, tag = 'input window, operand 2, single buffered']
    #allocation3 [shape = 's32[2]{0}', space=sflag, size = 0x8, scoped, tag = 'scoped memory for tpu_custom_call.1']
    #allocation4 [shape = 'u8[18432]{0}', space=vmem, size = 0x4800, scoped, tag = 'input window, operand 3, single buffered']
    #allocation5 [shape = 's32[1]{0}', space=sflag, size = 0x4, scoped, tag = 'scoped memory for tpu_custom_call.1']
    %9 = vsyncpa [#allocation3], 0
    %10 = vsyncpa [#allocation5], 0
    loop: start=0, step=1, limit=4
    $region2: #{tpu_custom_call.1} parent=1 // loop_pre_header
      _
    $region3: #{tpu_custom_call.1} parent=1 // loop_header
      %s12 = sphi 0, %s16
      %p13 = scmp.ge.s32.totalorder %s12, 4
      %s22 = sphi 0, %s24
      %s25 = sphi 0, %s22
      %s26 = sphi 0, %s25
      %s42 = sphi 0, %s26
      %s48 = sphi 0, %s50
      %s51 = sphi 0, %s48
      %s52 = sphi 0, %s51
      %s68 = sphi 0, %s52
      %s72 = sphi 0, %s72
      %s74 = sphi 0, %s72
      %s75 = sphi 0, %s74
      %s89 = sphi 0, %s75
      %s93 = sphi 0, %s93
      %s95 = sphi 0, %s93
      %s96 = sphi 0, %s95
      %s110 = sphi 0, %s96
      %s116 = sphi 0, %s118
      %s119 = sphi 0, %s116
      %s120 = sphi 0, %s119
      %s136 = sphi 0, %s120
    $region4: #{tpu_custom_call.1} parent=1 // loop_header_branch
      %15 = sbr.rel (%p13) target = $region8
    $region5: #{tpu_custom_call.1} parent=1 // loop_body
      %s17 = ssub.s32 %s12, 1
      %s18 = ssub.s32 %s12, 2
      %s19 = sadd.s32 %s12, 1
      %s20 = ssub.s32 %s12, %s19
      %p21 = scmp.eq.s32.totalorder %s20, 0
      %s23 = sadd.s32 %s22, 1
      %s24 = scalar_select %p21, %s22, %s23
      %p27 = pneg %p21
      %p28 = scmp.eq.s32.totalorder %s12, 1
      %p29 = por %p27, %p28
      %p30 = scmp.ne.s32.totalorder %s22, %s25
      %p31 = scmp.eq.s32.totalorder %s12, 0
      %p32 = por %p30, %p31
      %p33 = scmp.ne.s32.totalorder %s22, %s25
      %p34 = scmp.eq.s32.totalorder %s17, 1
      %p35 = por %p33, %p34
      %p36 = scmp.ne.s32.totalorder %s25, %s26
      %p37 = scmp.eq.s32.totalorder %s17, 0
      %p38 = por %p36, %p37
      %p39 = scmp.ne.s32.totalorder %s25, %s26
      %p40 = scmp.eq.s32.totalorder %s18, 1
      %p41 = por %p39, %p40
      %p43 = scmp.ne.s32.totalorder %s26, %s42
      %p44 = scmp.eq.s32.totalorder %s18, 0
      %p45 = por %p43, %p44
      %s46 = ssub.s32 %s12, %s19
      %p47 = scmp.eq.s32.totalorder %s46, 0
      %s49 = sadd.s32 %s48, 1
      %s50 = scalar_select %p47, %s48, %s49
      %p53 = pneg %p47
      %p54 = scmp.eq.s32.totalorder %s12, 1
      %p55 = por %p53, %p54
      %p56 = scmp.ne.s32.totalorder %s48, %s51
      %p57 = scmp.eq.s32.totalorder %s12, 0
      %p58 = por %p56, %p57
      %p59 = scmp.ne.s32.totalorder %s48, %s51
      %p60 = scmp.eq.s32.totalorder %s17, 1
      %p61 = por %p59, %p60
      %p62 = scmp.ne.s32.totalorder %s51, %s52
      %p63 = scmp.eq.s32.totalorder %s17, 0
      %p64 = por %p62, %p63
      %p65 = scmp.ne.s32.totalorder %s51, %s52
      %p66 = scmp.eq.s32.totalorder %s18, 1
      %p67 = por %p65, %p66
      %p69 = scmp.ne.s32.totalorder %s52, %s68
      %p70 = scmp.eq.s32.totalorder %s18, 0
      %p71 = por %p69, %p70
      %s73 = sadd.s32 %s72, 1
      %p76 = scmp.eq.s32.totalorder %s12, 1
      %p77 = scmp.ne.s32.totalorder %s72, %s74
      %p78 = scmp.eq.s32.totalorder %s12, 0
      %p79 = por %p77, %p78
      %p80 = scmp.ne.s32.totalorder %s72, %s74
      %p81 = scmp.eq.s32.totalorder %s17, 1
      %p82 = por %p80, %p81
      %p83 = scmp.ne.s32.totalorder %s74, %s75
      %p84 = scmp.eq.s32.totalorder %s17, 0
      %p85 = por %p83, %p84
      %p86 = scmp.ne.s32.totalorder %s74, %s75
      %p87 = scmp.eq.s32.totalorder %s18, 1
      %p88 = por %p86, %p87
      %p90 = scmp.ne.s32.totalorder %s75, %s89
      %p91 = scmp.eq.s32.totalorder %s18, 0
      %p92 = por %p90, %p91
      %s94 = sadd.s32 %s93, 1
      %p97 = scmp.eq.s32.totalorder %s12, 1
      %p98 = scmp.ne.s32.totalorder %s93, %s95
      %p99 = scmp.eq.s32.totalorder %s12, 0
      %p100 = por %p98, %p99
      %p101 = scmp.ne.s32.totalorder %s93, %s95
      %p102 = scmp.eq.s32.totalorder %s17, 1
      %p103 = por %p101, %p102
      %p104 = scmp.ne.s32.totalorder %s95, %s96
      %p105 = scmp.eq.s32.totalorder %s17, 0
      %p106 = por %p104, %p105
      %p107 = scmp.ne.s32.totalorder %s95, %s96
      %p108 = scmp.eq.s32.totalorder %s18, 1
      %p109 = por %p107, %p108
      %p111 = scmp.ne.s32.totalorder %s96, %s110
      %p112 = scmp.eq.s32.totalorder %s18, 0
      %p113 = por %p111, %p112
      %s114 = ssub.s32 %s12, %s19
      %p115 = scmp.eq.s32.totalorder %s114, 0
      %s117 = sadd.s32 %s116, 1
      %s118 = scalar_select %p115, %s116, %s117
      %p121 = pneg %p115
      %p122 = scmp.eq.s32.totalorder %s12, 1
      %p123 = por %p121, %p122
      %p124 = scmp.ne.s32.totalorder %s116, %s119
      %p125 = scmp.eq.s32.totalorder %s12, 0
      %p126 = por %p124, %p125
      %p127 = scmp.ne.s32.totalorder %s116, %s119
      %p128 = scmp.eq.s32.totalorder %s17, 1
      %p129 = por %p127, %p128
      %p130 = scmp.ne.s32.totalorder %s119, %s120
      %p131 = scmp.eq.s32.totalorder %s17, 0
      %p132 = por %p130, %p131
      %p133 = scmp.ne.s32.totalorder %s119, %s120
      %p134 = scmp.eq.s32.totalorder %s18, 1
      %p135 = por %p133, %p134
      %p137 = scmp.ne.s32.totalorder %s120, %s136
      %p138 = scmp.eq.s32.totalorder %s18, 0
      %p139 = por %p137, %p138
      %p140 = scmp.le.s32.totalorder 1, %s12
      %p141 = scmp.lt.s32.totalorder %s12, 3
      %p142 = pnand %p140, %p141
      %p143 = pneg %p142
      // Predicated region
      $region9: #{tpu_custom_call.1} parent=5 // pred_check
        _
      $region10: #{tpu_custom_call.1} parent=5 // pred_check_branch
        %145 = sbr.rel (%p142) target = $region12
      $region11: #{tpu_custom_call.1} parent=5 // pred_region
        %s146 = ssub.s32 %s12, 1
        // Predicated region
        $region13: #{tpu_custom_call.1} parent=11 // pred_check
          %p147 = pneg %p85
        $region14: #{tpu_custom_call.1} parent=11 // pred_check_branch
          %149 = sbr.rel (%p147) target = $region16
        $region15: #{tpu_custom_call.1} parent=11 // pred_region
          %s151 = ssub.s32 5760, 5760
          %152 = vsyncadd [#allocation3], %s151
          %s153 = sshll.u32 [#allocation2], 4
          %s154 = int_to_ptr.vmem [resolvable:$true] %s153
          %159 = dma.hbm_to_vmem [thread:$0]  %s2, 5760, %s154, [#allocation3], 1152, 1152, 72
        $region16: #{tpu_custom_call.1} parent=11 // pred_fallthru
          _
        // Predicated region
        $region17: #{tpu_custom_call.1} parent=11 // pred_check
          %p160 = pneg %p106
        $region18: #{tpu_custom_call.1} parent=11 // pred_check_branch
          %162 = sbr.rel (%p160) target = $region20
        $region19: #{tpu_custom_call.1} parent=11 // pred_region
          %s164 = ssub.s32 576, 576
          %165 = vsyncadd [#allocation5], %s164
          %s167 = sshll.u32 [#allocation4], 4
          %s168 = int_to_ptr.vmem [resolvable:$true] %s167
          %170 = dma.hbm_to_vmem [thread:$0]  %s3, 576, %s168, [#allocation5]
        $region20: #{tpu_custom_call.1} parent=11 // pred_fallthru
          _
      $region12: #{tpu_custom_call.1} parent=5 // pred_fallthru
        _
      %p171 = scmp.lt.s32.totalorder %s12, 2
      // Predicated region
      $region21: #{tpu_custom_call.1} parent=5 // pred_check
        %p172 = pneg %p171
      $region22: #{tpu_custom_call.1} parent=5 // pred_check_branch
        %174 = sbr.rel (%p172) target = $region24
      $region23: #{tpu_custom_call.1} parent=5 // pred_region
        // Predicated region
        $region25: #{tpu_custom_call.1} parent=23 // pred_check
          %p175 = pneg %p32
        $region26: #{tpu_custom_call.1} parent=23 // pred_check_branch
          %177 = sbr.rel (%p175) target = $region28
        $region27: #{tpu_custom_call.1} parent=23 // pred_region
          %p178 = scmp.lt.s32.totalorder %s12, 1
          %s179 = scalar_select %p178, %s12, 1
          %s180 = smul.addr %s179, 8
          %s181 = scalar_lea.vmem %s0, %s180
        $region28: #{tpu_custom_call.1} parent=23 // pred_fallthru
          _
        // Predicated region
        $region29: #{tpu_custom_call.1} parent=23 // pred_check
          %p182 = pneg %p58
        $region30: #{tpu_custom_call.1} parent=23 // pred_check_branch
          %184 = sbr.rel (%p182) target = $region32
        $region31: #{tpu_custom_call.1} parent=23 // pred_region
          %p185 = scmp.lt.s32.totalorder %s12, 1
          %s186 = scalar_select %p185, %s12, 1
          %s187 = smul.addr %s186, 8
          %s188 = scalar_lea.vmem %s1, %s187
        $region32: #{tpu_custom_call.1} parent=23 // pred_fallthru
          _
      $region24: #{tpu_custom_call.1} parent=5 // pred_fallthru
        _
      %p189 = scmp.le.s32.totalorder 1, %s12
      %p190 = scmp.lt.s32.totalorder %s12, 3
      %p191 = pnand %p189, %p190
      %p192 = pneg %p191
      // Predicated region
      $region33: #{tpu_custom_call.1} parent=5 // pred_check
        _
      $region34: #{tpu_custom_call.1} parent=5 // pred_check_branch
        %194 = sbr.rel (%p191) target = $region36
      $region35: #{tpu_custom_call.1} parent=5 // pred_region
        %s195 = ssub.s32 %s12, 1
        // Predicated region
        $region37: #{tpu_custom_call.1} parent=35 // pred_check
          %p196 = pneg %p85
        $region38: #{tpu_custom_call.1} parent=35 // pred_check_branch
          %198 = sbr.rel (%p196) target = $region40
        $region39: #{tpu_custom_call.1} parent=35 // pred_region
          %199 = dma.done [#allocation3], 5760
        $region40: #{tpu_custom_call.1} parent=35 // pred_fallthru
          _
        // Predicated region
        $region41: #{tpu_custom_call.1} parent=35 // pred_check
          %p200 = pneg %p106
        $region42: #{tpu_custom_call.1} parent=35 // pred_check_branch
          %202 = sbr.rel (%p200) target = $region44
        $region43: #{tpu_custom_call.1} parent=35 // pred_region
          %203 = dma.done [#allocation5], 576
        $region44: #{tpu_custom_call.1} parent=35 // pred_fallthru
          _
        %p204 = scmp.lt.s32.totalorder %s17, 1
        %s205 = scalar_select %p204, %s17, 1
        %s206 = smul.addr %s205, 8
        %s207 = scalar_lea.vmem %s0, %s206
        %p208 = pneg %p38
        %p209 = pneg %p35
        %p210 = scmp.lt.s32.totalorder %s17, 1
        %s211 = scalar_select %p210, %s17, 1
        %s212 = smul.addr %s211, 8
        %s213 = scalar_lea.vmem %s1, %s212
        %p214 = pneg %p64
        %p215 = pneg %p61
        %p216 = pneg %p85
        %p217 = pneg %p82
        %p218 = pneg %p106
        %p219 = pneg %p103
        %p220 = pneg %p132
        %p221 = pneg %p129
        %p222 = scmp.lt.s32.totalorder %s17, 1
        %s223 = scalar_select %p222, %s17, 1
        %s224 = smul.addr %s223, 8
        %s225 = scalar_lea.vmem %s4, %s224
        %p226 = scmp.lt.s32.totalorder %s17, 1
        %s227 = scalar_select %p226, %s17, 1
        %s228 = smul.addr %s227, 8
        %s229 = scalar_lea.vmem %s0, %s228
        %p230 = scmp.lt.s32.totalorder %s17, 1
        %s231 = scalar_select %p230, %s17, 1
        %s232 = smul.addr %s231, 8
        %s233 = scalar_lea.vmem %s1, %s232
        %p234 = scmp.lt.s32.totalorder %s17, 1
        %s235 = scalar_select %p234, %s17, 1
        %s236 = smul.addr %s235, 8
        %s237 = scalar_lea.vmem %s4, %s236
        %s238 = smul.u32 %s17, 8
        %v239 = vld [vmem:[%s233] sm:$0xff]
        %v240 = vld [vmem:[#allocation4] sm:$0xff]
        %v241 = vld [vmem:[#allocation4 + $0x8] sm:$0xff]
        %v242 = vld [vmem:[#allocation4 + $0x10] sm:$0xff]
        %v243 = vld [vmem:[#allocation4 + $0x18] sm:$0xff]
        %v244 = vld [vmem:[#allocation4 + $0x20] sm:$0xf]
        %v250 = vcombine.high %v240, %v240
        %v251 = vcombine.high %v241, %v241
        %v252 = vcombine.high %v242, %v242
        %v253 = vcombine.high %v243, %v243
        %vm254 = vcmask 31744
        %v256 = vsel %vm254, %v239, 0
        %vm258 = vcmask 1043456
        %v259 = vsel %vm258, %v240, 0
        %v261 = vsel %vm258, %v250, 0
        %v263 = vsel %vm258, %v241, 0
        %v265 = vsel %vm258, %v251, 0
        %v267 = vsel %vm258, %v242, 0
        %v269 = vsel %vm258, %v252, 0
        %v271 = vsel %vm258, %v243, 0
        %v273 = vsel %vm258, %v253, 0
        %v275 = vsel %vm258, %v244, 0
        %277 = vmatprep.subr.mxu0 0.0
        %278 = vmatpush1.msra.mxu0 0.0
        %279 = vmatprep.subr.mxu0 0.0
        %280 = vmatpush1.msra.mxu0 0.0
        %281 = vmatprep.subr.mxu0 0.0
        %282 = vmatpush1.msra.mxu0 0.0
        %283 = vmatprep.subr.mxu0 0.0
        %284 = vmatpush1.msra.mxu0 0.0
        %285 = vmatprep.subr.mxu0 0.0
        %286 = vmatpush1.msra.mxu0 0.0
        %287 = vmatprep.subr.mxu0 0.0
        %288 = vmatpush1.msra.mxu0 0.0
        %289 = vmatprep.subr.mxu0 0.0
        %290 = vmatpush1.msra.mxu0 0.0
        %291 = vmatprep.subr.mxu0 0.0
        %292 = vmatpush1.msra.mxu0 0.0
        %293 = vmatprep.subr.mxu0 0.0
        %294 = vmatpush1.msra.mxu0 0.0
        %295 = vmatprep.subr.mxu0 0.0
        %296 = vmatpush1.msra.mxu0 0.0
        %297 = vmatprep.subr.mxu0 0.0
        %298 = vmatpush1.msra.mxu0 0.0
        %299 = vmatprep.subr.mxu0 0.0
        %300 = vmatpush1.msra.mxu0 0.0
        %301 = vmatprep.subr.mxu0 0.0
        %302 = vmatpush1.msra.mxu0 0.0
        %303 = vmatprep.subr.mxu0 0.0
        %304 = vmatpush1.msra.mxu0 0.0
        %305 = vmatprep.subr.mxu0 0.0
        %306 = vmatpush1.msra.mxu0 0.0
        %307 = vmatprep.subr.mxu0 %v261
        %308 = vmatpush1.msra.mxu0 %v259
        %309 = vmatprep.subr.mxu0 0.0
        %310 = vmatpush2.msra.mxu0 0.0
        %311 = vmatprep.subr.mxu0 0.0
        %312 = vmatpush2.msra.mxu0 0.0
        %313 = vmatprep.subr.mxu0 0.0
        %314 = vmatpush2.msra.mxu0 0.0
        %315 = vmatprep.subr.mxu0 0.0
        %316 = vmatpush2.msra.mxu0 0.0
        %317 = vmatprep.subr.mxu0 0.0
        %318 = vmatpush2.msra.mxu0 0.0
        %319 = vmatprep.subr.mxu0 0.0
        %320 = vmatpush2.msra.mxu0 0.0
        %321 = vmatprep.subr.mxu0 0.0
        %322 = vmatpush2.msra.mxu0 0.0
        %323 = vmatprep.subr.mxu0 0.0
        %324 = vmatpush2.msra.mxu0 0.0
        %325 = vmatprep.subr.mxu0 0.0
        %326 = vmatpush2.msra.mxu0 0.0
        %327 = vmatprep.subr.mxu0 0.0
        %328 = vmatpush2.msra.mxu0 0.0
        %329 = vmatprep.subr.mxu0 0.0
        %330 = vmatpush2.msra.mxu0 0.0
        %331 = vmatprep.subr.mxu0 0.0
        %332 = vmatpush2.msra.mxu0 0.0
        %333 = vmatprep.subr.mxu0 0.0
        %334 = vmatpush2.msra.mxu0 0.0
        %335 = vmatprep.subr.mxu0 0.0
        %336 = vmatpush2.msra.mxu0 0.0
        %337 = vmatprep.subr.mxu0 0.0
        %338 = vmatpush2.msra.mxu0 0.0
        %339 = vmatprep.subr.mxu0 0.0
        %340 = vmatpush2.msra.mxu0 0.0
        %341 = vmatprep.mubr.f32.mxu0 0.0
        %342 = vmatmul.mubr.f32.gmra.mxu0 %v256
        %v343 = vpop.f32.mrf.mxu0
        %v344 = vadd.f32 0.0, %v343
        %v345 = vpop.f32.mrf.mxu0
        %v346 = vadd.f32 0.0, %v345
        %347 = vdwg.mxu0
        %348 = vmatprep.subr.mxu0 0.0
        %349 = vmatpush1.msra.mxu0 0.0
        %350 = vmatprep.subr.mxu0 0.0
        %351 = vmatpush1.msra.mxu0 0.0
        %352 = vmatprep.subr.mxu0 0.0
        %353 = vmatpush1.msra.mxu0 0.0
        %354 = vmatprep.subr.mxu0 0.0
        %355 = vmatpush1.msra.mxu0 0.0
        %356 = vmatprep.subr.mxu0 0.0
        %357 = vmatpush1.msra.mxu0 0.0
        %358 = vmatprep.subr.mxu0 0.0
        %359 = vmatpush1.msra.mxu0 0.0
        %360 = vmatprep.subr.mxu0 0.0
        %361 = vmatpush1.msra.mxu0 0.0
        %362 = vmatprep.subr.mxu0 0.0
        %363 = vmatpush1.msra.mxu0 0.0
        %364 = vmatprep.subr.mxu0 0.0
        %365 = vmatpush1.msra.mxu0 0.0
        %366 = vmatprep.subr.mxu0 0.0
        %367 = vmatpush1.msra.mxu0 0.0
        %368 = vmatprep.subr.mxu0 0.0
        %369 = vmatpush1.msra.mxu0 0.0
        %370 = vmatprep.subr.mxu0 0.0
        %371 = vmatpush1.msra.mxu0 0.0
        %372 = vmatprep.subr.mxu0 0.0
        %373 = vmatpush1.msra.mxu0 0.0
        %374 = vmatprep.subr.mxu0 0.0
        %375 = vmatpush1.msra.mxu0 0.0
        %376 = vmatprep.subr.mxu0 0.0
        %377 = vmatpush1.msra.mxu0 0.0
        %378 = vmatprep.subr.mxu0 %v265
        %379 = vmatpush1.msra.mxu0 %v263
        %380 = vmatprep.subr.mxu0 0.0
        %381 = vmatpush2.msra.mxu0 0.0
        %382 = vmatprep.subr.mxu0 0.0
        %383 = vmatpush2.msra.mxu0 0.0
        %384 = vmatprep.subr.mxu0 0.0
        %385 = vmatpush2.msra.mxu0 0.0
        %386 = vmatprep.subr.mxu0 0.0
        %387 = vmatpush2.msra.mxu0 0.0
        %388 = vmatprep.subr.mxu0 0.0
        %389 = vmatpush2.msra.mxu0 0.0
        %390 = vmatprep.subr.mxu0 0.0
        %391 = vmatpush2.msra.mxu0 0.0
        %392 = vmatprep.subr.mxu0 0.0
        %393 = vmatpush2.msra.mxu0 0.0
        %394 = vmatprep.subr.mxu0 0.0
        %395 = vmatpush2.msra.mxu0 0.0
        %396 = vmatprep.subr.mxu0 0.0
        %397 = vmatpush2.msra.mxu0 0.0
        %398 = vmatprep.subr.mxu0 0.0
        %399 = vmatpush2.msra.mxu0 0.0
        %400 = vmatprep.subr.mxu0 0.0
        %401 = vmatpush2.msra.mxu0 0.0
        %402 = vmatprep.subr.mxu0 0.0
        %403 = vmatpush2.msra.mxu0 0.0
        %404 = vmatprep.subr.mxu0 0.0
        %405 = vmatpush2.msra.mxu0 0.0
        %406 = vmatprep.subr.mxu0 0.0
        %407 = vmatpush2.msra.mxu0 0.0
        %408 = vmatprep.subr.mxu0 0.0
        %409 = vmatpush2.msra.mxu0 0.0
        %410 = vmatprep.subr.mxu0 0.0
        %411 = vmatpush2.msra.mxu0 0.0
        %412 = vmatprep.mubr.f32.mxu0 0.0
        %413 = vmatmul.mubr.f32.gmra.mxu0 %v256
        %v414 = vpop.f32.mrf.mxu0
        %v415 = vadd.f32 0.0, %v414
        %v416 = vpop.f32.mrf.mxu0
        %v417 = vadd.f32 0.0, %v416
        %418 = vdwg.mxu0
        %419 = vmatprep.subr.mxu0 0.0
        %420 = vmatpush1.msra.mxu0 0.0
        %421 = vmatprep.subr.mxu0 0.0
        %422 = vmatpush1.msra.mxu0 0.0
        %423 = vmatprep.subr.mxu0 0.0
        %424 = vmatpush1.msra.mxu0 0.0
        %425 = vmatprep.subr.mxu0 0.0
        %426 = vmatpush1.msra.mxu0 0.0
        %427 = vmatprep.subr.mxu0 0.0
        %428 = vmatpush1.msra.mxu0 0.0
        %429 = vmatprep.subr.mxu0 0.0
        %430 = vmatpush1.msra.mxu0 0.0
        %431 = vmatprep.subr.mxu0 0.0
        %432 = vmatpush1.msra.mxu0 0.0
        %433 = vmatprep.subr.mxu0 0.0
        %434 = vmatpush1.msra.mxu0 0.0
        %435 = vmatprep.subr.mxu0 0.0
        %436 = vmatpush1.msra.mxu0 0.0
        %437 = vmatprep.subr.mxu0 0.0
        %438 = vmatpush1.msra.mxu0 0.0
        %439 = vmatprep.subr.mxu0 0.0
        %440 = vmatpush1.msra.mxu0 0.0
        %441 = vmatprep.subr.mxu0 0.0
        %442 = vmatpush1.msra.mxu0 0.0
        %443 = vmatprep.subr.mxu0 0.0
        %444 = vmatpush1.msra.mxu0 0.0
        %445 = vmatprep.subr.mxu0 0.0
        %446 = vmatpush1.msra.mxu0 0.0
        %447 = vmatprep.subr.mxu0 0.0
        %448 = vmatpush1.msra.mxu0 0.0
        %449 = vmatprep.subr.mxu0 %v269
        %450 = vmatpush1.msra.mxu0 %v267
        %451 = vmatprep.subr.mxu0 0.0
        %452 = vmatpush2.msra.mxu0 0.0
        %453 = vmatprep.subr.mxu0 0.0
        %454 = vmatpush2.msra.mxu0 0.0
        %455 = vmatprep.subr.mxu0 0.0
        %456 = vmatpush2.msra.mxu0 0.0
        %457 = vmatprep.subr.mxu0 0.0
        %458 = vmatpush2.msra.mxu0 0.0
        %459 = vmatprep.subr.mxu0 0.0
        %460 = vmatpush2.msra.mxu0 0.0
        %461 = vmatprep.subr.mxu0 0.0
        %462 = vmatpush2.msra.mxu0 0.0
        %463 = vmatprep.subr.mxu0 0.0
        %464 = vmatpush2.msra.mxu0 0.0
        %465 = vmatprep.subr.mxu0 0.0
        %466 = vmatpush2.msra.mxu0 0.0
        %467 = vmatprep.subr.mxu0 0.0
        %468 = vmatpush2.msra.mxu0 0.0
        %469 = vmatprep.subr.mxu0 0.0
        %470 = vmatpush2.msra.mxu0 0.0
        %471 = vmatprep.subr.mxu0 0.0
        %472 = vmatpush2.msra.mxu0 0.0
        %473 = vmatprep.subr.mxu0 0.0
        %474 = vmatpush2.msra.mxu0 0.0
        %475 = vmatprep.subr.mxu0 0.0
        %476 = vmatpush2.msra.mxu0 0.0
        %477 = vmatprep.subr.mxu0 0.0
        %478 = vmatpush2.msra.mxu0 0.0
        %479 = vmatprep.subr.mxu0 0.0
        %480 = vmatpush2.msra.mxu0 0.0
        %481 = vmatprep.subr.mxu0 0.0
        %482 = vmatpush2.msra.mxu0 0.0
        %483 = vmatprep.mubr.f32.mxu0 0.0
        %484 = vmatmul.mubr.f32.gmra.mxu0 %v256
        %v485 = vpop.f32.mrf.mxu0
        %v486 = vadd.f32 0.0, %v485
        %v487 = vpop.f32.mrf.mxu0
        %v488 = vadd.f32 0.0, %v487
        %489 = vdwg.mxu0
        %490 = vmatprep.subr.mxu0 0.0
        %491 = vmatpush1.msra.mxu0 0.0
        %492 = vmatprep.subr.mxu0 0.0
        %493 = vmatpush1.msra.mxu0 0.0
        %494 = vmatprep.subr.mxu0 0.0
        %495 = vmatpush1.msra.mxu0 0.0
        %496 = vmatprep.subr.mxu0 0.0
        %497 = vmatpush1.msra.mxu0 0.0
        %498 = vmatprep.subr.mxu0 0.0
        %499 = vmatpush1.msra.mxu0 0.0
        %500 = vmatprep.subr.mxu0 0.0
        %501 = vmatpush1.msra.mxu0 0.0
        %502 = vmatprep.subr.mxu0 0.0
        %503 = vmatpush1.msra.mxu0 0.0
        %504 = vmatprep.subr.mxu0 0.0
        %505 = vmatpush1.msra.mxu0 0.0
        %506 = vmatprep.subr.mxu0 0.0
        %507 = vmatpush1.msra.mxu0 0.0
        %508 = vmatprep.subr.mxu0 0.0
        %509 = vmatpush1.msra.mxu0 0.0
        %510 = vmatprep.subr.mxu0 0.0
        %511 = vmatpush1.msra.mxu0 0.0
        %512 = vmatprep.subr.mxu0 0.0
        %513 = vmatpush1.msra.mxu0 0.0
        %514 = vmatprep.subr.mxu0 0.0
        %515 = vmatpush1.msra.mxu0 0.0
        %516 = vmatprep.subr.mxu0 0.0
        %517 = vmatpush1.msra.mxu0 0.0
        %518 = vmatprep.subr.mxu0 0.0
        %519 = vmatpush1.msra.mxu0 0.0
        %520 = vmatprep.subr.mxu0 %v273
        %521 = vmatpush1.msra.mxu0 %v271
        %522 = vmatprep.subr.mxu0 0.0
        %523 = vmatpush2.msra.mxu0 0.0
        %524 = vmatprep.subr.mxu0 0.0
        %525 = vmatpush2.msra.mxu0 0.0
        %526 = vmatprep.subr.mxu0 0.0
        %527 = vmatpush2.msra.mxu0 0.0
        %528 = vmatprep.subr.mxu0 0.0
        %529 = vmatpush2.msra.mxu0 0.0
        %530 = vmatprep.subr.mxu0 0.0
        %531 = vmatpush2.msra.mxu0 0.0
        %532 = vmatprep.subr.mxu0 0.0
        %533 = vmatpush2.msra.mxu0 0.0
        %534 = vmatprep.subr.mxu0 0.0
        %535 = vmatpush2.msra.mxu0 0.0
        %536 = vmatprep.subr.mxu0 0.0
        %537 = vmatpush2.msra.mxu0 0.0
        %538 = vmatprep.subr.mxu0 0.0
        %539 = vmatpush2.msra.mxu0 0.0
        %540 = vmatprep.subr.mxu0 0.0
        %541 = vmatpush2.msra.mxu0 0.0
        %542 = vmatprep.subr.mxu0 0.0
        %543 = vmatpush2.msra.mxu0 0.0
        %544 = vmatprep.subr.mxu0 0.0
        %545 = vmatpush2.msra.mxu0 0.0
        %546 = vmatprep.subr.mxu0 0.0
        %547 = vmatpush2.msra.mxu0 0.0
        %548 = vmatprep.subr.mxu0 0.0
        %549 = vmatpush2.msra.mxu0 0.0
        %550 = vmatprep.subr.mxu0 0.0
        %551 = vmatpush2.msra.mxu0 0.0
        %552 = vmatprep.subr.mxu0 0.0
        %553 = vmatpush2.msra.mxu0 0.0
        %554 = vmatprep.mubr.f32.mxu0 0.0
        %555 = vmatmul.mubr.f32.gmra.mxu0 %v256
        %v556 = vpop.f32.mrf.mxu0
        %v557 = vadd.f32 0.0, %v556
        %v558 = vpop.f32.mrf.mxu0
        %v559 = vadd.f32 0.0, %v558
        %560 = vdwg.mxu0
        %561 = vmatprep.subr.mxu0 0.0
        %562 = vmatpush1.msra.mxu0 0.0
        %563 = vmatprep.subr.mxu0 0.0
        %564 = vmatpush1.msra.mxu0 0.0
        %565 = vmatprep.subr.mxu0 0.0
        %566 = vmatpush1.msra.mxu0 0.0
        %567 = vmatprep.subr.mxu0 0.0
        %568 = vmatpush1.msra.mxu0 0.0
        %569 = vmatprep.subr.mxu0 0.0
        %570 = vmatpush1.msra.mxu0 0.0
        %571 = vmatprep.subr.mxu0 0.0
        %572 = vmatpush1.msra.mxu0 0.0
        %573 = vmatprep.subr.mxu0 0.0
        %574 = vmatpush1.msra.mxu0 0.0
        %575 = vmatprep.subr.mxu0 0.0
        %576 = vmatpush1.msra.mxu0 0.0
        %577 = vmatprep.subr.mxu0 0.0
        %578 = vmatpush1.msra.mxu0 0.0
        %579 = vmatprep.subr.mxu0 0.0
        %580 = vmatpush1.msra.mxu0 0.0
        %581 = vmatprep.subr.mxu0 0.0
        %582 = vmatpush1.msra.mxu0 0.0
        %583 = vmatprep.subr.mxu0 0.0
        %584 = vmatpush1.msra.mxu0 0.0
        %585 = vmatprep.subr.mxu0 0.0
        %586 = vmatpush1.msra.mxu0 0.0
        %587 = vmatprep.subr.mxu0 0.0
        %588 = vmatpush1.msra.mxu0 0.0
        %589 = vmatprep.subr.mxu0 0.0
        %590 = vmatpush1.msra.mxu0 0.0
        %591 = vmatprep.subr.mxu0 0.0
        %592 = vmatpush1.msra.mxu0 %v275
        %593 = vmatprep.subr.mxu0 0.0
        %594 = vmatpush2.msra.mxu0 0.0
        %595 = vmatprep.subr.mxu0 0.0
        %596 = vmatpush2.msra.mxu0 0.0
        %597 = vmatprep.subr.mxu0 0.0
        %598 = vmatpush2.msra.mxu0 0.0
        %599 = vmatprep.subr.mxu0 0.0
        %600 = vmatpush2.msra.mxu0 0.0
        %601 = vmatprep.subr.mxu0 0.0
        %602 = vmatpush2.msra.mxu0 0.0
        %603 = vmatprep.subr.mxu0 0.0
        %604 = vmatpush2.msra.mxu0 0.0
        %605 = vmatprep.subr.mxu0 0.0
        %606 = vmatpush2.msra.mxu0 0.0
        %607 = vmatprep.subr.mxu0 0.0
        %608 = vmatpush2.msra.mxu0 0.0
        %609 = vmatprep.subr.mxu0 0.0
        %610 = vmatpush2.msra.mxu0 0.0
        %611 = vmatprep.subr.mxu0 0.0
        %612 = vmatpush2.msra.mxu0 0.0
        %613 = vmatprep.subr.mxu0 0.0
        %614 = vmatpush2.msra.mxu0 0.0
        %615 = vmatprep.subr.mxu0 0.0
        %616 = vmatpush2.msra.mxu0 0.0
        %617 = vmatprep.subr.mxu0 0.0
        %618 = vmatpush2.msra.mxu0 0.0
        %619 = vmatprep.subr.mxu0 0.0
        %620 = vmatpush2.msra.mxu0 0.0
        %621 = vmatprep.subr.mxu0 0.0
        %622 = vmatpush2.msra.mxu0 0.0
        %623 = vmatprep.subr.mxu0 0.0
        %624 = vmatpush2.msra.mxu0 0.0
        %625 = vmatprep.mubr.f32.mxu0 0.0
        %626 = vmatmul.mubr.f32.gmra.mxu0 %v256
        %v627 = vpop.f32.mrf.mxu0
        %v628 = vadd.f32 0.0, %v627
        %v629 = vpop.f32.mrf.mxu0
        %630 = vdwg.mxu0
        %v631 = vld [vmem:[%s229] sm:$0xff]
        %v632 = vld [vmem:[#allocation2] sm:$0xff]
        %v633 = vld [vmem:[#allocation2 + $0x8] sm:$0xff]
        %v634 = vld [vmem:[#allocation2 + $0x10] sm:$0xff]
        %v635 = vld [vmem:[#allocation2 + $0x18] sm:$0xff]
        %v636 = vld [vmem:[#allocation2 + $0x20] sm:$0xff]
        %v637 = vld [vmem:[#allocation2 + $0x28] sm:$0xff]
        %v638 = vld [vmem:[#allocation2 + $0x30] sm:$0xff]
        %v639 = vld [vmem:[#allocation2 + $0x38] sm:$0xff]
        %v640 = vld [vmem:[#allocation2 + $0x40] sm:$0xff]
        %v641 = vld [vmem:[#allocation2 + $0x48] sm:$0xff]
        %v642 = vld [vmem:[#allocation2 + $0x50] sm:$0xff]
        %v643 = vld [vmem:[#allocation2 + $0x58] sm:$0xff]
        %v644 = vld [vmem:[#allocation2 + $0x60] sm:$0xff]
        %v645 = vld [vmem:[#allocation2 + $0x68] sm:$0xff]
        %v646 = vld [vmem:[#allocation2 + $0x70] sm:$0xff]
        %v647 = vld [vmem:[#allocation2 + $0x78] sm:$0xff]
        %v648 = vld [vmem:[#allocation2 + $0x80] sm:$0xff]
        %v649 = vld [vmem:[#allocation2 + $0x88] sm:$0xff]
        %v650 = vld [vmem:[#allocation2 + $0x90] sm:$0xff]
        %v651 = vld [vmem:[#allocation2 + $0x98] sm:$0xff]
        %v652 = vld [vmem:[#allocation2 + $0xa0] sm:$0xff]
        %v653 = vld [vmem:[#allocation2 + $0xa8] sm:$0xff]
        %v654 = vld [vmem:[#allocation2 + $0xb0] sm:$0xff]
        %v655 = vld [vmem:[#allocation2 + $0xb8] sm:$0xff]
        %v656 = vld [vmem:[#allocation2 + $0xc0] sm:$0xff]
        %v657 = vld [vmem:[#allocation2 + $0xc8] sm:$0xff]
        %v658 = vld [vmem:[#allocation2 + $0xd0] sm:$0xff]
        %v659 = vld [vmem:[#allocation2 + $0xd8] sm:$0xff]
        %v660 = vld [vmem:[#allocation2 + $0xe0] sm:$0xff]
        %v661 = vld [vmem:[#allocation2 + $0xe8] sm:$0xff]
        %v662 = vld [vmem:[#allocation2 + $0xf0] sm:$0xff]
        %v663 = vld [vmem:[#allocation2 + $0xf8] sm:$0xff]
        %v664 = vld [vmem:[#allocation2 + $0x100] sm:$0xff]
        %v665 = vld [vmem:[#allocation2 + $0x108] sm:$0xff]
        %v666 = vld [vmem:[#allocation2 + $0x110] sm:$0xff]
        %v667 = vld [vmem:[#allocation2 + $0x118] sm:$0xff]
        %v668 = vld [vmem:[#allocation2 + $0x120] sm:$0x1]
        %v669 = vld [vmem:[#allocation2 + $0x128] sm:$0x1]
        %v670 = vld [vmem:[#allocation2 + $0x130] sm:$0x1]
        %v671 = vld [vmem:[#allocation2 + $0x138] sm:$0x1]
        %v672 = vld [vmem:[#allocation2 + $0x140] sm:$0x1]
        %v673 = vld [vmem:[#allocation2 + $0x148] sm:$0x1]
        %v674 = vld [vmem:[#allocation2 + $0x150] sm:$0x1]
        %v675 = vld [vmem:[#allocation2 + $0x158] sm:$0x1]
        %v676 = vld [vmem:[#allocation2 + $0x160] sm:$0x1]
        %vm677 = vcmask 269312
        %v679 = vsel %vm677, %v631, 0
        %vm681 = vcmask 1040384
        %v683 = vsel %vm681, %v668, 0
        %v686 = vsel %vm681, %v669, 0
        %v689 = vsel %vm681, %v670, 0
        %v692 = vsel %vm681, %v671, 0
        %v695 = vsel %vm681, %v672, 0
        %v698 = vsel %vm681, %v673, 0
        %v701 = vsel %vm681, %v674, 0
        %v704 = vsel %vm681, %v675, 0
        %v707 = vsel %vm681, %v676, 0
        %709 = vmatprep.subr.mxu0 0.0
        %710 = vmatpush1.msra.mxu0 0.0
        %711 = vmatprep.subr.mxu0 0.0
        %712 = vmatpush1.msra.mxu0 0.0
        %713 = vmatprep.subr.mxu0 0.0
        %714 = vmatpush1.msra.mxu0 0.0
        %715 = vmatprep.subr.mxu0 0.0
        %716 = vmatpush1.msra.mxu0 0.0
        %717 = vmatprep.subr.mxu0 0.0
        %718 = vmatpush1.msra.mxu0 0.0
        %719 = vmatprep.subr.mxu0 0.0
        %720 = vmatpush1.msra.mxu0 0.0
        %721 = vmatprep.subr.mxu0 0.0
        %722 = vmatpush1.msra.mxu0 0.0
        %723 = vmatprep.subr.mxu0 0.0
        %724 = vmatpush1.msra.mxu0 0.0
        %725 = vmatprep.subr.mxu0 0.0
        %726 = vmatpush1.msra.mxu0 0.0
        %727 = vmatprep.subr.mxu0 0.0
        %728 = vmatpush1.msra.mxu0 0.0
        %729 = vmatprep.subr.mxu0 0.0
        %730 = vmatpush1.msra.mxu0 0.0
        %731 = vmatprep.subr.mxu0 %v686
        %732 = vmatpush1.msra.mxu0 %v683
        %733 = vmatprep.subr.mxu0 %v660
        %734 = vmatpush1.msra.mxu0 %v659
        %735 = vmatprep.subr.mxu0 %v651
        %736 = vmatpush1.msra.mxu0 %v650
        %737 = vmatprep.subr.mxu0 %v642
        %738 = vmatpush1.msra.mxu0 %v641
        %739 = vmatprep.subr.mxu0 %v633
        %740 = vmatpush1.msra.mxu0 %v632
        %741 = vmatprep.subr.mxu0 0.0
        %742 = vmatpush2.msra.mxu0 0.0
        %743 = vmatprep.subr.mxu0 0.0
        %744 = vmatpush2.msra.mxu0 0.0
        %745 = vmatprep.subr.mxu0 0.0
        %746 = vmatpush2.msra.mxu0 0.0
        %747 = vmatprep.subr.mxu0 0.0
        %748 = vmatpush2.msra.mxu0 0.0
        %749 = vmatprep.subr.mxu0 0.0
        %750 = vmatpush2.msra.mxu0 0.0
        %751 = vmatprep.subr.mxu0 0.0
        %752 = vmatpush2.msra.mxu0 0.0
        %753 = vmatprep.subr.mxu0 0.0
        %754 = vmatpush2.msra.mxu0 0.0
        %755 = vmatprep.subr.mxu0 0.0
        %756 = vmatpush2.msra.mxu0 0.0
        %757 = vmatprep.subr.mxu0 0.0
        %758 = vmatpush2.msra.mxu0 0.0
        %759 = vmatprep.subr.mxu0 0.0
        %760 = vmatpush2.msra.mxu0 0.0
        %761 = vmatprep.subr.mxu0 0.0
        %762 = vmatpush2.msra.mxu0 0.0
        %763 = vmatprep.subr.mxu0 0.0
        %764 = vmatpush2.msra.mxu0 0.0
        %765 = vmatprep.subr.mxu0 0.0
        %766 = vmatpush2.msra.mxu0 0.0
        %767 = vmatprep.subr.mxu0 0.0
        %768 = vmatpush2.msra.mxu0 0.0
        %769 = vmatprep.subr.mxu0 0.0
        %770 = vmatpush2.msra.mxu0 0.0
        %771 = vmatprep.subr.mxu0 0.0
        %772 = vmatpush2.msra.mxu0 0.0
        %773 = vmatprep.mubr.f32.mxu0 0.0
        %774 = vmatmul.mubr.f32.gmra.mxu0 %v679
        %v775 = vpop.f32.mrf.mxu0
        %v776 = vadd.f32 0.0, %v775
        %v777 = vpop.f32.mrf.mxu0
        %v778 = vadd.f32 0.0, %v777
        %779 = vdwg.mxu0
        %780 = vmatprep.subr.mxu0 0.0
        %781 = vmatpush1.msra.mxu0 0.0
        %782 = vmatprep.subr.mxu0 0.0
        %783 = vmatpush1.msra.mxu0 0.0
        %784 = vmatprep.subr.mxu0 0.0
        %785 = vmatpush1.msra.mxu0 0.0
        %786 = vmatprep.subr.mxu0 0.0
        %787 = vmatpush1.msra.mxu0 0.0
        %788 = vmatprep.subr.mxu0 0.0
        %789 = vmatpush1.msra.mxu0 0.0
        %790 = vmatprep.subr.mxu0 0.0
        %791 = vmatpush1.msra.mxu0 0.0
        %792 = vmatprep.subr.mxu0 0.0
        %793 = vmatpush1.msra.mxu0 0.0
        %794 = vmatprep.subr.mxu0 0.0
        %795 = vmatpush1.msra.mxu0 0.0
        %796 = vmatprep.subr.mxu0 0.0
        %797 = vmatpush1.msra.mxu0 0.0
        %798 = vmatprep.subr.mxu0 0.0
        %799 = vmatpush1.msra.mxu0 0.0
        %800 = vmatprep.subr.mxu0 0.0
        %801 = vmatpush1.msra.mxu0 0.0
        %802 = vmatprep.subr.mxu0 %v692
        %803 = vmatpush1.msra.mxu0 %v689
        %804 = vmatprep.subr.mxu0 %v662
        %805 = vmatpush1.msra.mxu0 %v661
        %806 = vmatprep.subr.mxu0 %v653
        %807 = vmatpush1.msra.mxu0 %v652
        %808 = vmatprep.subr.mxu0 %v644
        %809 = vmatpush1.msra.mxu0 %v643
        %810 = vmatprep.subr.mxu0 %v635
        %811 = vmatpush1.msra.mxu0 %v634
        %812 = vmatprep.subr.mxu0 0.0
        %813 = vmatpush2.msra.mxu0 0.0
        %814 = vmatprep.subr.mxu0 0.0
        %815 = vmatpush2.msra.mxu0 0.0
        %816 = vmatprep.subr.mxu0 0.0
        %817 = vmatpush2.msra.mxu0 0.0
        %818 = vmatprep.subr.mxu0 0.0
        %819 = vmatpush2.msra.mxu0 0.0
        %820 = vmatprep.subr.mxu0 0.0
        %821 = vmatpush2.msra.mxu0 0.0
        %822 = vmatprep.subr.mxu0 0.0
        %823 = vmatpush2.msra.mxu0 0.0
        %824 = vmatprep.subr.mxu0 0.0
        %825 = vmatpush2.msra.mxu0 0.0
        %826 = vmatprep.subr.mxu0 0.0
        %827 = vmatpush2.msra.mxu0 0.0
        %828 = vmatprep.subr.mxu0 0.0
        %829 = vmatpush2.msra.mxu0 0.0
        %830 = vmatprep.subr.mxu0 0.0
        %831 = vmatpush2.msra.mxu0 0.0
        %832 = vmatprep.subr.mxu0 0.0
        %833 = vmatpush2.msra.mxu0 0.0
        %834 = vmatprep.subr.mxu0 0.0
        %835 = vmatpush2.msra.mxu0 0.0
        %836 = vmatprep.subr.mxu0 0.0
        %837 = vmatpush2.msra.mxu0 0.0
        %838 = vmatprep.subr.mxu0 0.0
        %839 = vmatpush2.msra.mxu0 0.0
        %840 = vmatprep.subr.mxu0 0.0
        %841 = vmatpush2.msra.mxu0 0.0
        %842 = vmatprep.subr.mxu0 0.0
        %843 = vmatpush2.msra.mxu0 0.0
        %844 = vmatprep.mubr.f32.mxu0 0.0
        %845 = vmatmul.mubr.f32.gmra.mxu0 %v679
        %v846 = vpop.f32.mrf.mxu0
        %v847 = vadd.f32 0.0, %v846
        %v848 = vpop.f32.mrf.mxu0
        %v849 = vadd.f32 0.0, %v848
        %850 = vdwg.mxu0
        %851 = vmatprep.subr.mxu0 0.0
        %852 = vmatpush1.msra.mxu0 0.0
        %853 = vmatprep.subr.mxu0 0.0
        %854 = vmatpush1.msra.mxu0 0.0
        %855 = vmatprep.subr.mxu0 0.0
        %856 = vmatpush1.msra.mxu0 0.0
        %857 = vmatprep.subr.mxu0 0.0
        %858 = vmatpush1.msra.mxu0 0.0
        %859 = vmatprep.subr.mxu0 0.0
        %860 = vmatpush1.msra.mxu0 0.0
        %861 = vmatprep.subr.mxu0 0.0
        %862 = vmatpush1.msra.mxu0 0.0
        %863 = vmatprep.subr.mxu0 0.0
        %864 = vmatpush1.msra.mxu0 0.0
        %865 = vmatprep.subr.mxu0 0.0
        %866 = vmatpush1.msra.mxu0 0.0
        %867 = vmatprep.subr.mxu0 0.0
        %868 = vmatpush1.msra.mxu0 0.0
        %869 = vmatprep.subr.mxu0 0.0
        %870 = vmatpush1.msra.mxu0 0.0
        %871 = vmatprep.subr.mxu0 0.0
        %872 = vmatpush1.msra.mxu0 0.0
        %873 = vmatprep.subr.mxu0 %v698
        %874 = vmatpush1.msra.mxu0 %v695
        %875 = vmatprep.subr.mxu0 %v664
        %876 = vmatpush1.msra.mxu0 %v663
        %877 = vmatprep.subr.mxu0 %v655
        %878 = vmatpush1.msra.mxu0 %v654
        %879 = vmatprep.subr.mxu0 %v646
        %880 = vmatpush1.msra.mxu0 %v645
        %881 = vmatprep.subr.mxu0 %v637
        %882 = vmatpush1.msra.mxu0 %v636
        %883 = vmatprep.subr.mxu0 0.0
        %884 = vmatpush2.msra.mxu0 0.0
        %885 = vmatprep.subr.mxu0 0.0
        %886 = vmatpush2.msra.mxu0 0.0
        %887 = vmatprep.subr.mxu0 0.0
        %888 = vmatpush2.msra.mxu0 0.0
        %889 = vmatprep.subr.mxu0 0.0
        %890 = vmatpush2.msra.mxu0 0.0
        %891 = vmatprep.subr.mxu0 0.0
        %892 = vmatpush2.msra.mxu0 0.0
        %893 = vmatprep.subr.mxu0 0.0
        %894 = vmatpush2.msra.mxu0 0.0
        %895 = vmatprep.subr.mxu0 0.0
        %896 = vmatpush2.msra.mxu0 0.0
        %897 = vmatprep.subr.mxu0 0.0
        %898 = vmatpush2.msra.mxu0 0.0
        %899 = vmatprep.subr.mxu0 0.0
        %900 = vmatpush2.msra.mxu0 0.0
        %901 = vmatprep.subr.mxu0 0.0
        %902 = vmatpush2.msra.mxu0 0.0
        %903 = vmatprep.subr.mxu0 0.0
        %904 = vmatpush2.msra.mxu0 0.0
        %905 = vmatprep.subr.mxu0 0.0
        %906 = vmatpush2.msra.mxu0 0.0
        %907 = vmatprep.subr.mxu0 0.0
        %908 = vmatpush2.msra.mxu0 0.0
        %909 = vmatprep.subr.mxu0 0.0
        %910 = vmatpush2.msra.mxu0 0.0
        %911 = vmatprep.subr.mxu0 0.0
        %912 = vmatpush2.msra.mxu0 0.0
        %913 = vmatprep.subr.mxu0 0.0
        %914 = vmatpush2.msra.mxu0 0.0
        %915 = vmatprep.mubr.f32.mxu0 0.0
        %916 = vmatmul.mubr.f32.gmra.mxu0 %v679
        %v917 = vpop.f32.mrf.mxu0
        %v918 = vadd.f32 0.0, %v917
        %v919 = vpop.f32.mrf.mxu0
        %v920 = vadd.f32 0.0, %v919
        %921 = vdwg.mxu0
        %922 = vmatprep.subr.mxu0 0.0
        %923 = vmatpush1.msra.mxu0 0.0
        %924 = vmatprep.subr.mxu0 0.0
        %925 = vmatpush1.msra.mxu0 0.0
        %926 = vmatprep.subr.mxu0 0.0
        %927 = vmatpush1.msra.mxu0 0.0
        %928 = vmatprep.subr.mxu0 0.0
        %929 = vmatpush1.msra.mxu0 0.0
        %930 = vmatprep.subr.mxu0 0.0
        %931 = vmatpush1.msra.mxu0 0.0
        %932 = vmatprep.subr.mxu0 0.0
        %933 = vmatpush1.msra.mxu0 0.0
        %934 = vmatprep.subr.mxu0 0.0
        %935 = vmatpush1.msra.mxu0 0.0
        %936 = vmatprep.subr.mxu0 0.0
        %937 = vmatpush1.msra.mxu0 0.0
        %938 = vmatprep.subr.mxu0 0.0
        %939 = vmatpush1.msra.mxu0 0.0
        %940 = vmatprep.subr.mxu0 0.0
        %941 = vmatpush1.msra.mxu0 0.0
        %942 = vmatprep.subr.mxu0 0.0
        %943 = vmatpush1.msra.mxu0 0.0
        %944 = vmatprep.subr.mxu0 %v704
        %945 = vmatpush1.msra.mxu0 %v701
        %946 = vmatprep.subr.mxu0 %v666
        %947 = vmatpush1.msra.mxu0 %v665
        %948 = vmatprep.subr.mxu0 %v657
        %949 = vmatpush1.msra.mxu0 %v656
        %950 = vmatprep.subr.mxu0 %v648
        %951 = vmatpush1.msra.mxu0 %v647
        %952 = vmatprep.subr.mxu0 %v639
        %953 = vmatpush1.msra.mxu0 %v638
        %954 = vmatprep.subr.mxu0 0.0
        %955 = vmatpush2.msra.mxu0 0.0
        %956 = vmatprep.subr.mxu0 0.0
        %957 = vmatpush2.msra.mxu0 0.0
        %958 = vmatprep.subr.mxu0 0.0
        %959 = vmatpush2.msra.mxu0 0.0
        %960 = vmatprep.subr.mxu0 0.0
        %961 = vmatpush2.msra.mxu0 0.0
        %962 = vmatprep.subr.mxu0 0.0
        %963 = vmatpush2.msra.mxu0 0.0
        %964 = vmatprep.subr.mxu0 0.0
        %965 = vmatpush2.msra.mxu0 0.0
        %966 = vmatprep.subr.mxu0 0.0
        %967 = vmatpush2.msra.mxu0 0.0
        %968 = vmatprep.subr.mxu0 0.0
        %969 = vmatpush2.msra.mxu0 0.0
        %970 = vmatprep.subr.mxu0 0.0
        %971 = vmatpush2.msra.mxu0 0.0
        %972 = vmatprep.subr.mxu0 0.0
        %973 = vmatpush2.msra.mxu0 0.0
        %974 = vmatprep.subr.mxu0 0.0
        %975 = vmatpush2.msra.mxu0 0.0
        %976 = vmatprep.subr.mxu0 0.0
        %977 = vmatpush2.msra.mxu0 0.0
        %978 = vmatprep.subr.mxu0 0.0
        %979 = vmatpush2.msra.mxu0 0.0
        %980 = vmatprep.subr.mxu0 0.0
        %981 = vmatpush2.msra.mxu0 0.0
        %982 = vmatprep.subr.mxu0 0.0
        %983 = vmatpush2.msra.mxu0 0.0
        %984 = vmatprep.subr.mxu0 0.0
        %985 = vmatpush2.msra.mxu0 0.0
        %986 = vmatprep.mubr.f32.mxu0 0.0
        %987 = vmatmul.mubr.f32.gmra.mxu0 %v679
        %v988 = vpop.f32.mrf.mxu0
        %v989 = vadd.f32 0.0, %v988
        %v990 = vpop.f32.mrf.mxu0
        %v991 = vadd.f32 0.0, %v990
        %992 = vdwg.mxu0
        %993 = vmatprep.subr.mxu0 0.0
        %994 = vmatpush1.msra.mxu0 0.0
        %995 = vmatprep.subr.mxu0 0.0
        %996 = vmatpush1.msra.mxu0 0.0
        %997 = vmatprep.subr.mxu0 0.0
        %998 = vmatpush1.msra.mxu0 0.0
        %999 = vmatprep.subr.mxu0 0.0
        %1000 = vmatpush1.msra.mxu0 0.0
        %1001 = vmatprep.subr.mxu0 0.0
        %1002 = vmatpush1.msra.mxu0 0.0
        %1003 = vmatprep.subr.mxu0 0.0
        %1004 = vmatpush1.msra.mxu0 0.0
        %1005 = vmatprep.subr.mxu0 0.0
        %1006 = vmatpush1.msra.mxu0 0.0
        %1007 = vmatprep.subr.mxu0 0.0
        %1008 = vmatpush1.msra.mxu0 0.0
        %1009 = vmatprep.subr.mxu0 0.0
        %1010 = vmatpush1.msra.mxu0 0.0
        %1011 = vmatprep.subr.mxu0 0.0
        %1012 = vmatpush1.msra.mxu0 0.0
        %1013 = vmatprep.subr.mxu0 0.0
        %1014 = vmatpush1.msra.mxu0 0.0
        %1015 = vmatprep.subr.mxu0 0.0
        %1016 = vmatpush1.msra.mxu0 %v707
        %1017 = vmatprep.subr.mxu0 0.0
        %1018 = vmatpush1.msra.mxu0 %v667
        %1019 = vmatprep.subr.mxu0 0.0
        %1020 = vmatpush1.msra.mxu0 %v658
        %1021 = vmatprep.subr.mxu0 0.0
        %1022 = vmatpush1.msra.mxu0 %v649
        %1023 = vmatprep.subr.mxu0 0.0
        %1024 = vmatpush1.msra.mxu0 %v640
        %1025 = vmatprep.subr.mxu0 0.0
        %1026 = vmatpush2.msra.mxu0 0.0
        %1027 = vmatprep.subr.mxu0 0.0
        %1028 = vmatpush2.msra.mxu0 0.0
        %1029 = vmatprep.subr.mxu0 0.0
        %1030 = vmatpush2.msra.mxu0 0.0
        %1031 = vmatprep.subr.mxu0 0.0
        %1032 = vmatpush2.msra.mxu0 0.0
        %1033 = vmatprep.subr.mxu0 0.0
        %1034 = vmatpush2.msra.mxu0 0.0
        %1035 = vmatprep.subr.mxu0 0.0
        %1036 = vmatpush2.msra.mxu0 0.0
        %1037 = vmatprep.subr.mxu0 0.0
        %1038 = vmatpush2.msra.mxu0 0.0
        %1039 = vmatprep.subr.mxu0 0.0
        %1040 = vmatpush2.msra.mxu0 0.0
        %1041 = vmatprep.subr.mxu0 0.0
        %1042 = vmatpush2.msra.mxu0 0.0
        %1043 = vmatprep.subr.mxu0 0.0
        %1044 = vmatpush2.msra.mxu0 0.0
        %1045 = vmatprep.subr.mxu0 0.0
        %1046 = vmatpush2.msra.mxu0 0.0
        %1047 = vmatprep.subr.mxu0 0.0
        %1048 = vmatpush2.msra.mxu0 0.0
        %1049 = vmatprep.subr.mxu0 0.0
        %1050 = vmatpush2.msra.mxu0 0.0
        %1051 = vmatprep.subr.mxu0 0.0
        %1052 = vmatpush2.msra.mxu0 0.0
        %1053 = vmatprep.subr.mxu0 0.0
        %1054 = vmatpush2.msra.mxu0 0.0
        %1055 = vmatprep.subr.mxu0 0.0
        %1056 = vmatpush2.msra.mxu0 0.0
        %1057 = vmatprep.mubr.f32.mxu0 0.0
        %1058 = vmatmul.mubr.f32.gmra.mxu0 %v679
        %v1059 = vpop.f32.mrf.mxu0
        %v1060 = vadd.f32 0.0, %v1059
        %v1061 = vpop.f32.mrf.mxu0
        %1062 = vdwg.mxu0
        %v1063 = vlaneseq
        %v1064 = vshrl.u32 %v1063, 7
        %v1065 = vstv %s238
        %v1066 = vadd.s32 %v1065, %v1064
        %v1067 = vlaneseq
        %v1068 = vand.u32 %v1067, 127
        %v1069 = vadd.s32 %v1068, 128
        %v1070 = vadd.s32 %v1068, 256
        %v1071 = vadd.s32 %v1068, 384
        %v1072 = vadd.s32 %v1068, 512
        %v1073 = vadd.s32 %v1068, 640
        %v1074 = vadd.s32 %v1068, 768
        %v1075 = vadd.s32 %v1068, 896
        %v1076 = vadd.s32 %v1068, 1024
        %vm1077 = vcmp.eq.s32.totalorder %v1066, %v1068
        %vm1078 = vcmp.eq.s32.totalorder %v1066, %v1069
        %vm1079 = vcmp.eq.s32.totalorder %v1066, %v1070
        %vm1080 = vcmp.eq.s32.totalorder %v1066, %v1071
        %vm1081 = vcmp.eq.s32.totalorder %v1066, %v1072
        %vm1082 = vcmp.eq.s32.totalorder %v1066, %v1073
        %vm1083 = vcmp.eq.s32.totalorder %v1066, %v1074
        %vm1084 = vcmp.eq.s32.totalorder %v1066, %v1075
        %vm1085 = vcmp.eq.s32.totalorder %v1066, %v1076
        %v1086 = vmax.f32 %v776, %v918
        %v1087 = vmax.f32 %v778, %v920
        %v1088 = vmax.f32 %v847, %v989
        %v1089 = vmax.f32 %v849, %v991
        %v1090 = vmax.f32 %v1086, %v1060
        %v1091 = vmax.f32 %v1090, %v1087
        %v1092 = vmax.f32 %v1088, %v1089
        %v1093 = vmax.f32 %v1091, %v1092
        %1094 = vmax.xlane.f32.xlu0 %v1093
        %v1095 = vpop.xlane.xlu0 %1094
        %v1096 = vsub.f32 %v776, %v1095
        %v1097 = vsub.f32 %v778, %v1095
        %v1098 = vsub.f32 %v847, %v1095
        %v1099 = vsub.f32 %v849, %v1095
        %v1100 = vsub.f32 %v918, %v1095
        %v1101 = vsub.f32 %v920, %v1095
        %v1102 = vsub.f32 %v989, %v1095
        %v1103 = vsub.f32 %v991, %v1095
        %v1104 = vsub.f32 %v1060, %v1095
        %v1105 = vmul.f32 %v1096, 1.442695
        %v1106 = vpow.pop %v1105
        %v1107 = vmul.f32 %v1097, 1.442695
        %v1108 = vpow.pop %v1107
        %v1109 = vmul.f32 %v1098, 1.442695
        %v1110 = vpow.pop %v1109
        %v1111 = vmul.f32 %v1099, 1.442695
        %v1112 = vpow.pop %v1111
        %v1113 = vmul.f32 %v1100, 1.442695
        %v1114 = vpow.pop %v1113
        %v1115 = vmul.f32 %v1101, 1.442695
        %v1116 = vpow.pop %v1115
        %v1117 = vmul.f32 %v1102, 1.442695
        %v1118 = vpow.pop %v1117
        %v1119 = vmul.f32 %v1103, 1.442695
        %v1120 = vpow.pop %v1119
        %v1121 = vmul.f32 %v1104, 1.442695
        %v1122 = vpow.pop %v1121
        %v1123 = vsel %vm1077, 0.0, %v1106
        %v1124 = vsel %vm1078, 0.0, %v1108
        %v1125 = vsel %vm1079, 0.0, %v1110
        %v1126 = vsel %vm1080, 0.0, %v1112
        %v1127 = vsel %vm1081, 0.0, %v1114
        %v1128 = vsel %vm1082, 0.0, %v1116
        %v1129 = vsel %vm1083, 0.0, %v1118
        %v1130 = vsel %vm1084, 0.0, %v1120
        %v1131 = vsel %vm1085, 0.0, %v1122
        %v1132 = vadd.f32 %v1123, %v1124
        %v1133 = vadd.f32 %v1132, %v1125
        %v1134 = vadd.f32 %v1133, %v1126
        %v1135 = vadd.f32 %v1134, %v1127
        %v1136 = vadd.f32 %v1135, %v1128
        %v1137 = vadd.f32 %v1136, %v1129
        %v1138 = vadd.f32 %v1137, %v1130
        %v1139 = vadd.f32 %v1138, %v1131
        %1140 = vadd.xlane.f32.xlu0 %v1139
        %v1141 = vpop.xlane.xlu0 %1140
        %v1142 = vlog2.pop %v1141
        %v1143 = vmul.f32 %v1142, 0.6931472
        %v1144 = vsel %vm1077, 0.0, %v344
        %v1145 = vsel %vm1078, 0.0, %v346
        %v1146 = vsel %vm1079, 0.0, %v415
        %v1147 = vsel %vm1080, 0.0, %v417
        %v1148 = vsel %vm1081, 0.0, %v486
        %v1149 = vsel %vm1082, 0.0, %v488
        %v1150 = vsel %vm1083, 0.0, %v557
        %v1151 = vsel %vm1084, 0.0, %v559
        %v1152 = vsel %vm1085, 0.0, %v628
        %v1153 = vadd.f32 %v1144, %v1145
        %v1154 = vadd.f32 %v1153, %v1146
        %v1155 = vadd.f32 %v1154, %v1147
        %v1156 = vadd.f32 %v1155, %v1148
        %v1157 = vadd.f32 %v1156, %v1149
        %v1158 = vadd.f32 %v1157, %v1150
        %v1159 = vadd.f32 %v1158, %v1151
        %v1160 = vadd.f32 %v1159, %v1152
        %1161 = vadd.xlane.f32.xlu0 %v1160
        %v1162 = vpop.xlane.xlu0 %1161
        %v1163 = vmul.f32 %v1144, %v1096
        %v1164 = vmul.f32 %v1145, %v1097
        %v1165 = vmul.f32 %v1146, %v1098
        %v1166 = vmul.f32 %v1147, %v1099
        %v1167 = vmul.f32 %v1148, %v1100
        %v1168 = vmul.f32 %v1149, %v1101
        %v1169 = vmul.f32 %v1150, %v1102
        %v1170 = vmul.f32 %v1151, %v1103
        %v1171 = vmul.f32 %v1152, %v1104
        %v1172 = vadd.f32 %v1163, %v1164
        %v1173 = vadd.f32 %v1172, %v1165
        %v1174 = vadd.f32 %v1173, %v1166
        %v1175 = vadd.f32 %v1174, %v1167
        %v1176 = vadd.f32 %v1175, %v1168
        %v1177 = vadd.f32 %v1176, %v1169
        %v1178 = vadd.f32 %v1177, %v1170
        %v1179 = vadd.f32 %v1178, %v1171
        %1180 = vadd.xlane.f32.xlu0 %v1179
        %v1181 = vpop.xlane.xlu0 %1180
        %v1182 = vmul.f32 %v1143, %v1162
        %v1183 = vsub.f32 %v1181, %v1182
        %v1184 = vadd.f32 %v1162, 1e-08
        %v1185 = vmul.f32 %v1183, -1.0
        %v1186 = vrcp.pop %v1184
        %v1187 = vmul.f32 %v1185, %v1186
        %vm1188 = vcmask 7168
        %1189 = vst.msk [vmem:[%s237] sm:$0xff] %vm1188, %v1187
        %p1190 = scmp.lt.s32.totalorder %s17, 1
        %s1191 = scalar_select %p1190, %s17, 1
        %s1192 = smul.addr %s1191, 8
        %s1193 = scalar_lea.vmem %s4, %s1192
        // Predicated region
        $region45: #{tpu_custom_call.1} parent=35 // pred_check
          %p1194 = pneg %p129
        $region46: #{tpu_custom_call.1} parent=35 // pred_check_branch
          %1196 = sbr.rel (%p1194) target = $region48
        $region47: #{tpu_custom_call.1} parent=35 // pred_region
          _
        $region48: #{tpu_custom_call.1} parent=35 // pred_fallthru
          _
      $region36: #{tpu_custom_call.1} parent=5 // pred_fallthru
        _
      %p1197 = scmp.le.s32.totalorder 2, %s12
      // Predicated region
      $region49: #{tpu_custom_call.1} parent=5 // pred_check
        %p1198 = pneg %p1197
      $region50: #{tpu_custom_call.1} parent=5 // pred_check_branch
        %1200 = sbr.rel (%p1198) target = $region52
      $region51: #{tpu_custom_call.1} parent=5 // pred_region
        %s1201 = ssub.s32 %s12, 2
        // Predicated region
        $region53: #{tpu_custom_call.1} parent=51 // pred_check
          %p1202 = pneg %p135
        $region54: #{tpu_custom_call.1} parent=51 // pred_check_branch
          %1204 = sbr.rel (%p1202) target = $region56
        $region55: #{tpu_custom_call.1} parent=51 // pred_region
          %p1205 = scmp.lt.s32.totalorder %s18, 1
          %s1206 = scalar_select %p1205, %s18, 1
          %s1207 = smul.addr %s1206, 8
          %s1208 = scalar_lea.vmem %s4, %s1207
        $region56: #{tpu_custom_call.1} parent=51 // pred_fallthru
          _
      $region52: #{tpu_custom_call.1} parent=5 // pred_fallthru
        _
    $region6: #{tpu_custom_call.1} parent=1 // loop_footer
      %s16 = sadd.s32 1, %s12
    $region7: #{tpu_custom_call.1} parent=1 // loop_footer_branch
      %11 = sbr.rel target = $region3
    $region8: #{tpu_custom_call.1} parent=1 // loop_exit
      _
    %1209 = vsyncpa [#allocation3], 1
    %s1210 = scalar_lea.sflag [#allocation3], 1
    %1211 = vsyncpa %s1210, 1
    %1212 = vsyncpa [#allocation5], 1

</llo_original>
